<compile_context>
chip_gen: v7x
topology: tpu7x:2x2x1
jax: 0.10.0
libtpu: 0.0.40
codegen_flags: <defaults>
</compile_context>

<pallas_src>
import functools

import jax
import jax.numpy as jnp
from jax.experimental import pallas as pl
from jax.experimental.pallas import tpu as pltpu


def _round_up(x, m):
    return ((x + m - 1) // m) * m


def _frozen_bn_kernel(x_ref, p_ref, o_ref, *, apply_relu):
    # x_ref: (row_tile, L); p_ref: (row_tile, 2) f32 with [:,0:1]=scale, [:,1:2]=bias.
    scale = p_ref[:, 0:1]
    bias = p_ref[:, 1:2]
    y = x_ref[...].astype(jnp.float32) * scale + bias
    if apply_relu:
        y = jnp.maximum(y, 0.0)
    o_ref[...] = y.astype(o_ref.dtype)


def _vmem_capacity_bytes():
    try:
        return int(pltpu.get_tpu_info().vmem_capacity_bytes)
    except Exception:
        return 64 << 20  # conservative fallback (v7x per-TC VMEM)


def _choose_tiling(R, L, itemsize):
    """Pick a row tile (multiple of the dtype's sublane tile) and a VMEM limit."""
    cap = _vmem_capacity_bytes()
    budget = max(16 << 20, cap - (16 << 20))          # leave Mosaic/XLA headroom
    # ~8 MiB x-tiles on 128-MiB-VMEM chips (v5e/v6e), ~6 MiB on v7x (64 MiB/TC).
    target_x_bytes = (8 << 20) if cap > (64 << 20) else (6 << 20)

    sublane = {4: 8, 2: 16, 1: 32}.get(itemsize, 8)   # native (sublane,128) tile rows
    L_pad = _round_up(L, 128)                         # lane padding in VMEM
    x_row_bytes = L_pad * itemsize
    # Double-buffered VMEM per row: x block + out block + lane-padded f32 params.
    per_row_vmem = 2 * (2 * x_row_bytes + 128 * 4)

    rows = min(target_x_bytes // x_row_bytes, budget // per_row_vmem)
    rows = max(sublane, (rows // sublane) * sublane)
    rows = min(rows, _round_up(R, sublane))
    # Keep >= 2 grid steps so both v7x TensorCores get work (costs one extra
    # ~0.35us step on single-TC v5e/v6e; negligible).
    if rows >= R and R >= 2 * sublane:
        rows = _round_up((R + 1) // 2, sublane)

    needed = rows * per_row_vmem + (4 << 20)
    vmem_limit = max(32 << 20, min(cap - (8 << 20), needed + (8 << 20)))
    return rows, int(vmem_limit)


@functools.partial(jax.jit, static_argnames=("eps", "apply_relu"))
def frozen_batch_norm_2d(x, weight, bias, running_mean, running_var,
                         eps=1e-5, apply_relu=False):
    """x: (N, C, H, W); params: (C,). Matches torch FrozenBatchNorm2d.forward
    (optionally with a fused ReLU epilogue)."""
    N, C, H, W = x.shape
    R, L = N * C, H * W
    itemsize = jnp.dtype(x.dtype).itemsize

    # Fold the frozen statistics once, in f32 (tiny (C,) math).
    w32 = weight.astype(jnp.float32)
    b32 = bias.astype(jnp.float32)
    rm32 = running_mean.astype(jnp.float32)
    rv32 = running_var.astype(jnp.float32)
    scale_c = w32 * jax.lax.rsqrt(rv32 + eps)
    bias_c = b32 - rm32 * scale_c
    # One (scale, bias) pair per (n, c) row, kept in f32.
    params = jnp.tile(jnp.stack([scale_c, bias_c], axis=-1), (N, 1))  # (R, 2)

    x2 = x.reshape(R, L)

    row_tile, vmem_limit = _choose_tiling(R, L, itemsize)
    num_tiles = pl.cdiv(R, row_tile)

    kernel = functools.partial(_frozen_bn_kernel, apply_relu=apply_relu)

    out2 = pl.pallas_call(
        kernel,
        out_shape=jax.ShapeDtypeStruct((R, L), x.dtype),
        grid_spec=pltpu.PrefetchScalarGridSpec(
            num_scalar_prefetch=0,
            grid=(num_tiles,),
            in_specs=[
                pl.BlockSpec((row_tile, L), lambda i: (i, 0)),
                pl.BlockSpec((row_tile, 2), lambda i: (i, 0)),
            ],
            # Ragged final block: out-of-bounds writes are masked by Pallas,
            # so no wrapper-side pad/slice HBM passes are needed.
            out_specs=pl.BlockSpec((row_tile, L), lambda i: (i, 0)),
        ),
        compiler_params=pltpu.CompilerParams(
            dimension_semantics=("parallel",),
            vmem_limit_bytes=vmem_limit,
        ),
        cost_estimate=pl.CostEstimate(
            flops=(3 if apply_relu else 2) * R * L,
            transcendentals=0,
            bytes_accessed=2 * R * L * itemsize + R * 2 * 4,
        ),
    )(x2, params)

    return out2.reshape(N, C, H, W)


def _reference(x, weight, bias, running_mean, running_var, eps=1e-5, apply_relu=False):
    w4 = weight.reshape(1, -1, 1, 1).astype(jnp.float32)
    b4 = bias.reshape(1, -1, 1, 1).astype(jnp.float32)
    rv4 = running_var.reshape(1, -1, 1, 1).astype(jnp.float32)
    rm4 = running_mean.reshape(1, -1, 1, 1).astype(jnp.float32)
    scale = w4 * jax.lax.rsqrt(rv4 + eps)
    y = x.astype(jnp.float32) * scale + (b4 - rm4 * scale)
    if apply_relu:
        y = jnp.maximum(y, 0.0)
    return y.astype(x.dtype)


if __name__ == "__main__":
    key = jax.random.PRNGKey(0)

    def make_case(key, N, C, H, W):
        kx, kw, kb, km, kv = jax.random.split(key, 5)
        x = jax.random.normal(kx, (N, C, H, W), dtype=jnp.float32)
        weight = jnp.ones((C,), jnp.float32) + 0.1 * jax.random.normal(kw, (C,), jnp.float32)
        bias = jnp.zeros((C,), jnp.float32) + 0.1 * jax.random.normal(kb, (C,), jnp.float32)
        running_mean = 0.1 * jax.random.normal(km, (C,), jnp.float32)
        running_var = jnp.ones((C,), jnp.float32) + 0.1 * jnp.abs(
            jax.random.normal(kv, (C,), jnp.float32)
        )
        return x, weight, bias, running_mean, running_var

    k1, k2, k3 = jax.random.split(key, 3)

    def check(case, apply_relu=False, tag=""):
        out = jax.block_until_ready(frozen_batch_norm_2d(*case, apply_relu=apply_relu))
        ref = _reference(*case, apply_relu=apply_relu)
        assert out.shape == case[0].shape and out.dtype == case[0].dtype, tag
        err = float(jnp.max(jnp.abs(out - ref)))
        assert jnp.allclose(out, ref, atol=1e-5, rtol=1e-5), (tag, err)

    # Primary small case (module's expected usage shape).
    check(make_case(k1, 2, 4, 16, 16), tag="case1")
    # Ragged rows (R = 2*5 = 10): exercises masked out-of-bounds block writes.
    check(make_case(k2, 2, 5, 16, 16), tag="case2_ragged")
    # Larger case: exercises multiple grid tiles / parallel row axis.
    check(make_case(k3, 4, 64, 16, 16), tag="case3_multitile")
    # Fused ReLU epilogue path.
    check(make_case(k1, 2, 4, 16, 16), apply_relu=True, tag="case4_relu")

    print("KERNEL_OK")
</pallas_src>

<mosaic_0001>
module attributes {stable_mosaic.version = 11 : i64} {
  func.func @_frozen_bn_kernel(%arg0: i32, %arg1: memref<8x256xf32, #tpu.memory_space<vmem>>, %arg2: memref<8x2xf32, #tpu.memory_space<vmem>>, %arg3: memref<8x256xf32, #tpu.memory_space<vmem>>) attributes {dimension_semantics = [#tpu.dimension_semantics<parallel>], iteration_bounds = array<i64: 1>, scalar_prefetch = 0 : i64, scratch_operands = 0 : i64, tpu.core_type = #tpu.core_type<tc>, window_params = [{transform_indices = @transform_0, window_bounds = array<i64: 8, 256>}, {transform_indices = @transform_1, window_bounds = array<i64: 8, 2>}, {transform_indices = @transform_2, window_bounds = array<i64: 8, 256>}]} {
    %c0 = arith.constant 0 : index
    %c0_0 = arith.constant 0 : index
    %0 = vector.load %arg2[%c0, %c0_0] : memref<8x2xf32, #tpu.memory_space<vmem>>, vector<8x1xf32>
    %c0_1 = arith.constant 0 : index
    %c1 = arith.constant 1 : index
    %1 = vector.load %arg2[%c0_1, %c1] : memref<8x2xf32, #tpu.memory_space<vmem>>, vector<8x1xf32>
    %c0_2 = arith.constant 0 : index
    %c0_3 = arith.constant 0 : index
    %2 = vector.load %arg1[%c0_2, %c0_3] : memref<8x256xf32, #tpu.memory_space<vmem>>, vector<8x256xf32>
    %3 = vector.broadcast %0 : vector<8x1xf32> to vector<8x256xf32>
    %4 = arith.mulf %2, %3 : vector<8x256xf32>
    %5 = vector.broadcast %1 : vector<8x1xf32> to vector<8x256xf32>
    %6 = arith.addf %4, %5 : vector<8x256xf32>
    %c0_4 = arith.constant 0 : index
    %c0_5 = arith.constant 0 : index
    %7 = vector.load %arg3[%c0_4, %c0_5] : memref<8x256xf32, #tpu.memory_space<vmem>>, vector<8x256xf32>
    tpu.vector_store %arg3[%c0_4, %c0_5], %6 {strides = array<i32>} : memref<8x256xf32, #tpu.memory_space<vmem>>, vector<8x256xf32>,
    return
  }
  func.func @transform_0(%arg0: i32) -> (i32, i32) {
    %c0_i32 = arith.constant 0 : i32
    %c0_i32_0 = arith.constant 0 : i32
    return %arg0, %c0_i32 : i32, i32
  }
  func.func @transform_1(%arg0: i32) -> (i32, i32) {
    %c0_i32 = arith.constant 0 : i32
    %c0_i32_0 = arith.constant 0 : i32
    return %arg0, %c0_i32 : i32, i32
  }
  func.func @transform_2(%arg0: i32) -> (i32, i32) {
    %c0_i32 = arith.constant 0 : i32
    %c0_i32_0 = arith.constant 0 : i32
    return %arg0, %c0_i32 : i32, i32
  }
}

</mosaic_0001>

<llo_original>
// kernel: frozen_batch_norm_2d.1
$region0: #{frozen_batch_norm_2d.1}
  #allocation0 [shape = 'u32[]', space=smem, size = 0x4, offset = 0x4, fixed_abs, tag = 'smem constant byte address 0x4 - core index']
  #allocation1 [shape = 'u32[144,128]{1,0:T(1,128)}', space=vmem, size = 0x12000, scoped, tag = 'internal scratch']
  %s0 = inlined_call_operand.vmem [shape: f32[8,256], index: 0, kind: input, shape index: {}]
  %s1 = inlined_call_operand.vmem [shape: f32[8,2], index: 1, kind: input, shape index: {}]
  %s2 = inlined_call_operand.vmem [shape: f32[8,256], index: 2, kind: output, shape index: {}]
  %s3 = sld [smem:[#allocation0]]
  $region18: #{frozen_batch_norm_2d.1} parent=0
    _
  %s5 = ssub.s32 1, %s3
  %s6 = scalar_select 0, %s5, %s3
  // Predicated region
  $region2: #{frozen_batch_norm_2d.1} parent=0 // pred_check
    _
  $region3: #{frozen_batch_norm_2d.1} parent=0 // pred_check_branch
    %8 = sbr.rel (0) target = $region5
  $region4: #{frozen_batch_norm_2d.1} parent=0 // pred_region
    _
  $region5: #{frozen_batch_norm_2d.1} parent=0 // pred_fallthru
    _
  // Predicated region
  $region6: #{frozen_batch_norm_2d.1} parent=0 // pred_check
    _
  $region7: #{frozen_batch_norm_2d.1} parent=0 // pred_check_branch
    %10 = sbr.rel (0) target = $region9
  $region8: #{frozen_batch_norm_2d.1} parent=0 // pred_region
    _
  $region9: #{frozen_batch_norm_2d.1} parent=0 // pred_fallthru
    _
  %v11 = vld [vmem:[%s1] sm:$0xff]
  %v12 = vld [vmem:[%s0] sm:$0xff]
  %v13 = vld [vmem:[%s0 + $0x8] sm:$0xff]
  %15 = vset.pattern.permute.xlu0 0
  %16 = vperm.xlu0 %15, %v11
  %v17 = vpop.permute.xlu0 %16
  %v19 = vmul.f32 %v12, %v17
  %v20 = vmul.f32 %v13, %v17
  %21 = vset.pattern.permute.xlu0 1
  %22 = vperm.xlu0 %21, %v11
  %v23 = vpop.permute.xlu0 %22
  %v25 = vadd.f32 %v19, %v23
  %v26 = vadd.f32 %v20, %v23
  %27 = vst [vmem:[%s2] sm:$0xff] %v25
  %28 = vst [vmem:[%s2 + $0x8] sm:$0xff] %v26
  // Predicated region
  $region10: #{frozen_batch_norm_2d.1} parent=0 // pred_check
    _
  $region11: #{frozen_batch_norm_2d.1} parent=0 // pred_check_branch
    %30 = sbr.rel (0) target = $region13
  $region12: #{frozen_batch_norm_2d.1} parent=0 // pred_region
    _
  $region13: #{frozen_batch_norm_2d.1} parent=0 // pred_fallthru
    _
  // Predicated region
  $region14: #{frozen_batch_norm_2d.1} parent=0 // pred_check
    _
  $region15: #{frozen_batch_norm_2d.1} parent=0 // pred_check_branch
    %32 = sbr.rel (0) target = $region17
  $region16: #{frozen_batch_norm_2d.1} parent=0 // pred_region
    _
  $region17: #{frozen_batch_norm_2d.1} parent=0 // pred_fallthru
    _

</llo_original>
